<compile_context>
chip_gen: v7x
topology: tpu7x:2x2x1
jax: 0.10.0
libtpu: 0.0.40
codegen_flags: <defaults>
</compile_context>

<pallas_src>
import functools

import jax
import jax.numpy as jnp
from jax.experimental import pallas as pl
from jax.experimental.pallas import tpu as pltpu


# --------------------------------------------------------------------------
# Kernels
# --------------------------------------------------------------------------
def _laplace_kernel_2d(x_ref, o_ref):
    """Blocks of whole (H, W) planes: x_ref/o_ref are (bt, H, W) in I/O dtype."""
    x = x_ref[...].astype(jnp.float32)          # upcast after the (native-dtype) DMA
    H = x.shape[1]
    W = x.shape[2]

    h_idx = jax.lax.broadcasted_iota(jnp.int32, x.shape, 1)
    w_idx = jax.lax.broadcasted_iota(jnp.int32, x.shape, 2)

    # roll(x, s)[i] = x[i - s]; mask the wrapped border row/col to zero
    # (reproduces conv2d's zero padding).  Running accumulation keeps the
    # number of live full-block temporaries low.
    acc = -4.0 * x
    acc = acc + jnp.where(h_idx == 0,     0.0, pltpu.roll(x, 1,     axis=1))  # x[h-1]
    acc = acc + jnp.where(h_idx == H - 1, 0.0, pltpu.roll(x, H - 1, axis=1))  # x[h+1]
    acc = acc + jnp.where(w_idx == 0,     0.0, pltpu.roll(x, 1,     axis=2))  # x[w-1]
    acc = acc + jnp.where(w_idx == W - 1, 0.0, pltpu.roll(x, W - 1, axis=2))  # x[w+1]

    o_ref[...] = acc.astype(o_ref.dtype)        # downcast before the store


def _laplace_kernel_flat(x_ref, m_ref, o_ref, *, W):
    """Lane-dense flattened planes: x_ref/o_ref are (bt, H*W); m_ref is (4, H*W)
    f32 validity masks [left, right, up, down] precomputed in the wrapper."""
    x = x_ref[...].astype(jnp.float32)
    HW = x.shape[-1]
    m = m_ref[...]                               # (4, HW) float32

    s_up = W % HW
    s_dn = (HW - W) % HW

    acc = -4.0 * x
    acc = acc + m[0:1, :] * pltpu.roll(x, 1,      axis=1)   # left:  x[p-1]
    acc = acc + m[1:2, :] * pltpu.roll(x, HW - 1, axis=1)   # right: x[p+1]
    acc = acc + m[2:3, :] * pltpu.roll(x, s_up,   axis=1)   # up:    x[p-W]
    acc = acc + m[3:4, :] * pltpu.roll(x, s_dn,   axis=1)   # down:  x[p+W]

    o_ref[...] = acc.astype(o_ref.dtype)


# --------------------------------------------------------------------------
# Wrapper helpers
# --------------------------------------------------------------------------
def _round_up(a, m):
    return (a + m - 1) // m * m


def _vmem_capacity_bytes():
    """Physical VMEM per TensorCore; conservative v7x (64 MiB) fallback."""
    try:
        info = pltpu.get_tpu_info()
        v = getattr(info, "vmem_capacity_bytes", None)
        if v:
            return int(v)
    except Exception:
        pass
    return 64 * 1024 * 1024


def _pick_bt(B, row_elems_padded, io_bytes, budget_total, sub_mult):
    """Budget-limited rows-per-block (no divisibility requirement on B)."""
    # Footprint per element: 2x double-buffered input + 2x output blocks in
    # the I/O dtype, plus ~8 full-block f32/i32 temporaries (upcast copy,
    # accumulator, roll results, iota/masks) materialized by the body.
    per_elem = 4 * io_bytes + 32
    bytes_per_row = max(1, row_elems_padded * per_elem)
    cap = max(1, budget_total // bytes_per_row)
    # Keep >= ~4 grid steps when possible: pipeline overlap everywhere and
    # both TensorCores busy on v7x along the "parallel" axis.
    target = max(1, (B + 3) // 4)
    bt = max(1, min(cap, target, B))
    if sub_mult > 1 and bt < B:
        # bt is the second-to-last block dim in the flattened layout; keep it
        # sublane-tile aligned (16 covers f32/bf16/fp16 packing) or == B.
        bt = max(sub_mult, (bt // sub_mult) * sub_mult)
        bt = min(bt, B)
    return bt


# --------------------------------------------------------------------------
# Public wrapper (Pallas equivalent of GetLaplace.forward)
# --------------------------------------------------------------------------
def get_laplace(x, *, bt=None):
    """x: (N, C, H, W).  Returns same-shape, same-dtype Laplacian (zero pad)."""
    N, C, H, W = x.shape
    B = N * C
    HW = H * W
    dtype = x.dtype
    io_bytes = jnp.dtype(dtype).itemsize

    # --- per-generation VMEM budget -------------------------------------
    phys = _vmem_capacity_bytes()
    budget_total = min(int(phys * 0.7), 96 * 1024 * 1024)          # total footprint target
    vmem_limit = int(min(phys - 8 * 1024 * 1024,
                         budget_total + 16 * 1024 * 1024))
    vmem_limit = max(vmem_limit, 32 * 1024 * 1024)

    # --- layout selection -------------------------------------------------
    # Lane-dense flattened planes when W is lane-sparse but H*W is lane-aligned.
    use_flat = (W % 128 != 0) and (HW % 128 == 0)

    if use_flat:
        row_elems = HW                      # already a multiple of 128 lanes
        sub_mult = 16
    else:
        row_elems = _round_up(H, 16) * _round_up(W, 128)   # padded plane
        sub_mult = 1

    if bt is None:
        bt = _pick_bt(B, row_elems, io_bytes, budget_total, sub_mult)
    bt = max(1, min(int(bt), B))
    grid = (pl.cdiv(B, bt),)                # partial last block is fine

    compiler_params = pltpu.CompilerParams(
        dimension_semantics=("parallel",),
        vmem_limit_bytes=vmem_limit,
    )

    if use_flat:
        x2 = x.reshape(B, HW)               # contiguous -> free reshape
        p = jnp.arange(HW, dtype=jnp.int32)
        w = p % W
        masks = jnp.stack(
            [
                (w != 0).astype(jnp.float32),        # left  neighbour valid
                (w != W - 1).astype(jnp.float32),    # right neighbour valid
                (p >= W).astype(jnp.float32),        # up    neighbour valid
                (p < HW - W).astype(jnp.float32),    # down  neighbour valid
            ],
            axis=0,
        )                                            # (4, HW) float32

        out = pl.pallas_call(
            functools.partial(_laplace_kernel_flat, W=W),
            out_shape=jax.ShapeDtypeStruct((B, HW), dtype),
            grid=grid,
            in_specs=[
                pl.BlockSpec((bt, HW), lambda i: (i, 0)),
                pl.BlockSpec((4, HW), lambda i: (0, 0)),
            ],
            out_specs=pl.BlockSpec((bt, HW), lambda i: (i, 0)),
            compiler_params=compiler_params,
        )(x2, masks)
        return out.reshape(N, C, H, W)

    x3 = x.reshape(B, H, W)
    out = pl.pallas_call(
        _laplace_kernel_2d,
        out_shape=jax.ShapeDtypeStruct((B, H, W), dtype),
        grid=grid,
        in_specs=[pl.BlockSpec((bt, H, W), lambda i: (i, 0, 0))],
        out_specs=pl.BlockSpec((bt, H, W), lambda i: (i, 0, 0)),
        compiler_params=compiler_params,
    )(x3)
    return out.reshape(N, C, H, W)


# --------------------------------------------------------------------------
# Reference + self-test
# --------------------------------------------------------------------------
def _reference_laplace(x):
    xf = x.astype(jnp.float32)
    xp = jnp.pad(xf, ((0, 0), (0, 0), (1, 1), (1, 1)))
    return (xp[:, :, :-2, 1:-1] + xp[:, :, 2:, 1:-1] +
            xp[:, :, 1:-1, :-2] + xp[:, :, 1:-1, 2:] - 4.0 * xf)


if __name__ == "__main__":
    key = jax.random.PRNGKey(0)
    k1, k2, k3 = jax.random.split(key, 3)

    # Primary case implied by the module: small NCHW, W=16 < 128 -> exercises
    # the lane-dense flattened-plane path.
    x = jax.random.normal(k1, (2, 4, 16, 16), dtype=jnp.float32)
    y = jax.block_until_ready(get_laplace(x))
    ref = _reference_laplace(x)
    assert y.shape == x.shape and y.dtype == x.dtype, (y.shape, y.dtype)
    assert jnp.allclose(y, ref, rtol=1e-5, atol=1e-5), \
        float(jnp.max(jnp.abs(y - ref)))

    # Lane-aligned W (2-D path) with bf16 I/O: native-dtype DMA, f32 math,
    # bf16 store.
    xb = jax.random.normal(k2, (2, 3, 8, 128), dtype=jnp.bfloat16)
    yb = jax.block_until_ready(get_laplace(xb))
    refb = _reference_laplace(xb)
    assert yb.dtype == jnp.bfloat16, yb.dtype
    assert jnp.allclose(yb.astype(jnp.float32), refb, rtol=5e-2, atol=1e-1), \
        float(jnp.max(jnp.abs(yb.astype(jnp.float32) - refb)))

    # Awkward B with forced bt (B=5, bt=2): exercises the cdiv grid with a
    # partial last block on the 2-D path.
    xc = jax.random.normal(k3, (5, 1, 8, 128), dtype=jnp.float32)
    yc = jax.block_until_ready(get_laplace(xc, bt=2))
    refc = _reference_laplace(xc)
    assert jnp.allclose(yc, refc, rtol=1e-5, atol=1e-5), \
        float(jnp.max(jnp.abs(yc - refc)))

    print("KERNEL_OK")
</pallas_src>

<mosaic_0001>
module attributes {stable_mosaic.version = 11 : i64} {
  func.func @_laplace_kernel_flat(%arg0: i32, %arg1: memref<8x256xf32, #tpu.memory_space<vmem>>, %arg2: memref<4x256xf32, #tpu.memory_space<vmem>>, %arg3: memref<8x256xf32, #tpu.memory_space<vmem>>) attributes {dimension_semantics = [#tpu.dimension_semantics<parallel>], iteration_bounds = array<i64: 1>, scalar_prefetch = 0 : i64, scratch_operands = 0 : i64, tpu.core_type = #tpu.core_type<tc>, window_params = [{transform_indices = @transform_0, window_bounds = array<i64: 8, 256>}, {pipeline_mode = #tpu.pipeline_mode<synchronous>, transform_indices = @transform_1, window_bounds = array<i64: 4, 256>}, {transform_indices = @transform_2, window_bounds = array<i64: 8, 256>}]} {
    %c0 = arith.constant 0 : index
    %c0_0 = arith.constant 0 : index
    %0 = vector.load %arg1[%c0, %c0_0] : memref<8x256xf32, #tpu.memory_space<vmem>>, vector<8x256xf32>
    %c0_1 = arith.constant 0 : index
    %c0_2 = arith.constant 0 : index
    %1 = vector.load %arg2[%c0_1, %c0_2] : memref<4x256xf32, #tpu.memory_space<vmem>>, vector<4x256xf32>
    %cst = arith.constant -4.000000e+00 : f32
    %2 = vector.broadcast %cst : f32 to vector<8x256xf32>
    %3 = arith.mulf %2, %0 : vector<8x256xf32>
    %4 = vector.extract_strided_slice %1 {offsets = [0, 0], sizes = [1, 256], strides = [1, 1]} : vector<4x256xf32> to vector<1x256xf32>
    %c1_i32 = arith.constant 1 : i32
    %5 = tpu.dynamic_rotate %0 by %c1_i32 dim 1 : vector<8x256xf32>, i32 -> vector<8x256xf32>
    %6 = vector.broadcast %4 : vector<1x256xf32> to vector<8x256xf32>
    %7 = arith.mulf %6, %5 : vector<8x256xf32>
    %8 = arith.addf %3, %7 : vector<8x256xf32>
    %9 = vector.extract_strided_slice %1 {offsets = [1, 0], sizes = [1, 256], strides = [1, 1]} : vector<4x256xf32> to vector<1x256xf32>
    %c255_i32 = arith.constant 255 : i32
    %10 = tpu.dynamic_rotate %0 by %c255_i32 dim 1 : vector<8x256xf32>, i32 -> vector<8x256xf32>
    %11 = vector.broadcast %9 : vector<1x256xf32> to vector<8x256xf32>
    %12 = arith.mulf %11, %10 : vector<8x256xf32>
    %13 = arith.addf %8, %12 : vector<8x256xf32>
    %14 = vector.extract_strided_slice %1 {offsets = [2, 0], sizes = [1, 256], strides = [1, 1]} : vector<4x256xf32> to vector<1x256xf32>
    %c16_i32 = arith.constant 16 : i32
    %15 = tpu.dynamic_rotate %0 by %c16_i32 dim 1 : vector<8x256xf32>, i32 -> vector<8x256xf32>
    %16 = vector.broadcast %14 : vector<1x256xf32> to vector<8x256xf32>
    %17 = arith.mulf %16, %15 : vector<8x256xf32>
    %18 = arith.addf %13, %17 : vector<8x256xf32>
    %19 = vector.extract_strided_slice %1 {offsets = [3, 0], sizes = [1, 256], strides = [1, 1]} : vector<4x256xf32> to vector<1x256xf32>
    %c240_i32 = arith.constant 240 : i32
    %20 = tpu.dynamic_rotate %0 by %c240_i32 dim 1 : vector<8x256xf32>, i32 -> vector<8x256xf32>
    %21 = vector.broadcast %19 : vector<1x256xf32> to vector<8x256xf32>
    %22 = arith.mulf %21, %20 : vector<8x256xf32>
    %23 = arith.addf %18, %22 : vector<8x256xf32>
    %c0_3 = arith.constant 0 : index
    %c0_4 = arith.constant 0 : index
    %24 = vector.load %arg3[%c0_3, %c0_4] : memref<8x256xf32, #tpu.memory_space<vmem>>, vector<8x256xf32>
    tpu.vector_store %arg3[%c0_3, %c0_4], %23 {strides = array<i32>} : memref<8x256xf32, #tpu.memory_space<vmem>>, vector<8x256xf32>,
    return
  }
  func.func @transform_0(%arg0: i32) -> (i32, i32) {
    %c0_i32 = arith.constant 0 : i32
    %c0_i32_0 = arith.constant 0 : i32
    return %arg0, %c0_i32 : i32, i32
  }
  func.func @transform_1(%arg0: i32) -> (i32, i32) {
    %c0_i32 = arith.constant 0 : i32
    %c0_i32_0 = arith.constant 0 : i32
    %c0_i32_1 = arith.constant 0 : i32
    return %c0_i32, %c0_i32_0 : i32, i32
  }
  func.func @transform_2(%arg0: i32) -> (i32, i32) {
    %c0_i32 = arith.constant 0 : i32
    %c0_i32_0 = arith.constant 0 : i32
    return %arg0, %c0_i32 : i32, i32
  }
}

</mosaic_0001>

<llo_original>
// kernel: tpu_custom_call.1
$region0: #{tpu_custom_call.1}
  #allocation0 [shape = 'u32[]', space=smem, size = 0x4, offset = 0x4, fixed_abs, tag = 'smem constant byte address 0x4 - core index']
  #allocation1 [shape = 'u32[144,128]{1,0:T(1,128)}', space=vmem, size = 0x12000, scoped, tag = 'internal scratch']
  %s0 = inlined_call_operand.hbm [shape: f32[8,256], index: 0, kind: input, shape index: {}]
  %s1 = inlined_call_operand.hbm [shape: f32[4,256], index: 1, kind: input, shape index: {}]
  %s2 = inlined_call_operand.hbm [shape: f32[8,256], index: 2, kind: output, shape index: {}]
  %s3 = sld [smem:[#allocation0]]
  $region26: #{tpu_custom_call.1} parent=0
    _
  %s5 = ssub.s32 1, %s3
  %s6 = scalar_select 0, %s5, %s3
  $region1: #{tpu_custom_call.1} parent=0
    #allocation2 [shape = 'u8[8192]{0}', space=vmem, size = 0x2000, scoped, tag = 'input window, operand 0, single buffered']
    #allocation3 [shape = 's32[1]{0}', space=sflag, size = 0x4, scoped, tag = 'scoped memory for tpu_custom_call.1']
    #allocation4 [shape = 's32[1]{0}', space=sflag, size = 0x4, scoped, tag = 'scoped memory for tpu_custom_call.1']
    #allocation5 [shape = 'u8[4096]{0}', space=vmem, size = 0x1000, scoped, tag = 'input window, operand 1, single buffered']
    #allocation6 [shape = 's32[1]{0}', space=sflag, size = 0x4, scoped, tag = 'scoped memory for tpu_custom_call.1']
    #allocation7 [shape = 'u8[8192]{0}', space=vmem, size = 0x2000, scoped, tag = 'output window, operand 0, single buffered']
    %7 = vsyncpa [#allocation3], 0
    %8 = vsyncpa [#allocation6], 0
    %9 = vsyncpa [#allocation4], 0
    // Predicated region
    $region2: #{tpu_custom_call.1} parent=1 // pred_check
      _
    $region3: #{tpu_custom_call.1} parent=1 // pred_check_branch
      %11 = sbr.rel (0) target = $region5
    $region4: #{tpu_custom_call.1} parent=1 // pred_region
      %s13 = ssub.s32 256, 256
      %14 = vsyncadd [#allocation3], %s13
      %s16 = sshll.u32 [#allocation2], 4
      %s17 = int_to_ptr.vmem [resolvable:$true] %s16
      %19 = dma.hbm_to_vmem [thread:$0]  %s0, 256, %s17, [#allocation3]
    $region5: #{tpu_custom_call.1} parent=1 // pred_fallthru
      _
    // Predicated region
    $region6: #{tpu_custom_call.1} parent=1 // pred_check
      _
    $region7: #{tpu_custom_call.1} parent=1 // pred_check_branch
      %21 = sbr.rel (0) target = $region9
    $region8: #{tpu_custom_call.1} parent=1 // pred_region
      %s23 = ssub.s32 128, 128
      %24 = vsyncadd [#allocation6], %s23
      %s26 = sshll.u32 [#allocation5], 4
      %s27 = int_to_ptr.vmem [resolvable:$true] %s26
      %29 = dma.hbm_to_vmem [thread:$0]  %s1, 128, %s27, [#allocation6]
    $region9: #{tpu_custom_call.1} parent=1 // pred_fallthru
      _
    // Predicated region
    $region10: #{tpu_custom_call.1} parent=1 // pred_check
      _
    $region11: #{tpu_custom_call.1} parent=1 // pred_check_branch
      %31 = sbr.rel (0) target = $region13
    $region12: #{tpu_custom_call.1} parent=1 // pred_region
      %32 = dma.done [#allocation3], 256
    $region13: #{tpu_custom_call.1} parent=1 // pred_fallthru
      _
    // Predicated region
    $region14: #{tpu_custom_call.1} parent=1 // pred_check
      _
    $region15: #{tpu_custom_call.1} parent=1 // pred_check_branch
      %34 = sbr.rel (0) target = $region17
    $region16: #{tpu_custom_call.1} parent=1 // pred_region
      %35 = dma.done [#allocation6], 128
    $region17: #{tpu_custom_call.1} parent=1 // pred_fallthru
      _
    %v36 = vld [vmem:[#allocation2] sm:$0xff]
    %v37 = vld [vmem:[#allocation2 + $0x8] sm:$0xff]
    %v38 = vld [vmem:[#allocation5] sm:$0xff]
    %v39 = vmul.f32 %v36, -4.0
    %v40 = vmul.f32 %v37, -4.0
    %41 = vrot.lane.b32.xlu0 %v36, 1
    %v42 = vpop.permute.xlu0 %41
    %43 = vrot.lane.b32.xlu0 %v37, 1
    %v44 = vpop.permute.xlu0 %43
    %v45 = vlaneseq
    %v46 = vand.u32 %v45, 127
    %vm47 = vcmp.lt.s32.totalorder %v46, 1
    %v48 = vsel %vm47, %v42, %v44
    %v49 = vsel %vm47, %v44, %v42
    %v51 = vlaneseq
    %v52 = vshrl.u32 %v51, 7
    %v53 = vsub.s32 0, %v52
    %v54 = vrot.slane %v38, %v53
    %v55 = vlaneseq
    %v56 = vshrl.u32 %v55, 7
    %v57 = vsub.s32 4, %v56
    %v58 = vrot.slane %v38, %v57
    %v61 = vlaneseq
    %v62 = vshrl.u32 %v61, 7
    %v63 = vsub.s32 0, %v62
    %v64 = vrot.slane %v54, %v63
    %v65 = vlaneseq
    %v66 = vshrl.u32 %v65, 7
    %v67 = vsub.s32 0, %v66
    %v68 = vrot.slane %v58, %v67
    %v69 = vmul.f32 %v64, %v49
    %v70 = vmul.f32 %v68, %v48
    %v71 = vadd.f32 %v39, %v69
    %v72 = vadd.f32 %v40, %v70
    %73 = vrot.lane.b32.xlu0 %v36, 127
    %v74 = vpop.permute.xlu0 %73
    %75 = vrot.lane.b32.xlu0 %v37, 127
    %v76 = vpop.permute.xlu0 %75
    %vm77 = vcmp.lt.s32.totalorder %v46, 127
    %v78 = vsel %vm77, %v74, %v76
    %v79 = vsel %vm77, %v76, %v74
    %v80 = vlaneseq
    %v81 = vshrl.u32 %v80, 7
    %v82 = vsub.s32 1, %v81
    %v83 = vrot.slane %v38, %v82
    %v84 = vlaneseq
    %v85 = vshrl.u32 %v84, 7
    %v86 = vsub.s32 5, %v85
    %v87 = vrot.slane %v38, %v86
    %v90 = vlaneseq
    %v91 = vshrl.u32 %v90, 7
    %v92 = vsub.s32 1, %v91
    %v93 = vrot.slane %v83, %v92
    %v94 = vlaneseq
    %v95 = vshrl.u32 %v94, 7
    %v96 = vsub.s32 1, %v95
    %v97 = vrot.slane %v87, %v96
    %v98 = vmul.f32 %v93, %v78
    %v99 = vmul.f32 %v97, %v79
    %v100 = vadd.f32 %v71, %v98
    %v101 = vadd.f32 %v72, %v99
    %102 = vrot.lane.b32.xlu0 %v36, 16
    %v103 = vpop.permute.xlu0 %102
    %104 = vrot.lane.b32.xlu0 %v37, 16
    %v105 = vpop.permute.xlu0 %104
    %vm106 = vcmp.lt.s32.totalorder %v46, 16
    %v107 = vsel %vm106, %v103, %v105
    %v108 = vsel %vm106, %v105, %v103
    %v109 = vlaneseq
    %v110 = vshrl.u32 %v109, 7
    %v111 = vsub.s32 2, %v110
    %v112 = vrot.slane %v38, %v111
    %v113 = vlaneseq
    %v114 = vshrl.u32 %v113, 7
    %v115 = vsub.s32 6, %v114
    %v116 = vrot.slane %v38, %v115
    %v119 = vlaneseq
    %v120 = vshrl.u32 %v119, 7
    %v121 = vsub.s32 2, %v120
    %v122 = vrot.slane %v112, %v121
    %v123 = vlaneseq
    %v124 = vshrl.u32 %v123, 7
    %v125 = vsub.s32 2, %v124
    %v126 = vrot.slane %v116, %v125
    %v127 = vmul.f32 %v122, %v108
    %v128 = vmul.f32 %v126, %v107
    %v129 = vadd.f32 %v100, %v127
    %v130 = vadd.f32 %v101, %v128
    %131 = vrot.lane.b32.xlu0 %v36, 112
    %v132 = vpop.permute.xlu0 %131
    %133 = vrot.lane.b32.xlu0 %v37, 112
    %v134 = vpop.permute.xlu0 %133
    %vm135 = vcmp.lt.s32.totalorder %v46, 112
    %v136 = vsel %vm135, %v132, %v134
    %v137 = vsel %vm135, %v134, %v132
    %v138 = vlaneseq
    %v139 = vshrl.u32 %v138, 7
    %v140 = vsub.s32 3, %v139
    %v141 = vrot.slane %v38, %v140
    %v142 = vlaneseq
    %v143 = vshrl.u32 %v142, 7
    %v144 = vsub.s32 7, %v143
    %v145 = vrot.slane %v38, %v144
    %v148 = vlaneseq
    %v149 = vshrl.u32 %v148, 7
    %v150 = vsub.s32 3, %v149
    %v151 = vrot.slane %v141, %v150
    %v152 = vlaneseq
    %v153 = vshrl.u32 %v152, 7
    %v154 = vsub.s32 3, %v153
    %v155 = vrot.slane %v145, %v154
    %v156 = vmul.f32 %v151, %v136
    %v157 = vmul.f32 %v155, %v137
    %v158 = vadd.f32 %v129, %v156
    %v159 = vadd.f32 %v130, %v157
    %160 = vst [vmem:[#allocation7] sm:$0xff] %v158
    %161 = vst [vmem:[#allocation7 + $0x8] sm:$0xff] %v159
    // Predicated region
    $region18: #{tpu_custom_call.1} parent=1 // pred_check
      _
    $region19: #{tpu_custom_call.1} parent=1 // pred_check_branch
      %163 = sbr.rel (0) target = $region21
    $region20: #{tpu_custom_call.1} parent=1 // pred_region
      %s165 = ssub.s32 256, 256
      %166 = vsyncadd [#allocation4], %s165
      %s168 = sshll.u32 [#allocation7], 4
      %s169 = int_to_ptr.vmem [resolvable:$true] %s168
      %171 = dma.vmem_to_hbm [thread:$0]  %s169, 256, %s2, [#allocation4]
    $region21: #{tpu_custom_call.1} parent=1 // pred_fallthru
      _
    // Predicated region
    $region22: #{tpu_custom_call.1} parent=1 // pred_check
      _
    $region23: #{tpu_custom_call.1} parent=1 // pred_check_branch
      %173 = sbr.rel (0) target = $region25
    $region24: #{tpu_custom_call.1} parent=1 // pred_region
      %174 = dma.done [#allocation4], 256
    $region25: #{tpu_custom_call.1} parent=1 // pred_fallthru
      _
    %175 = vsyncpa [#allocation3], 1
    %176 = vsyncpa [#allocation6], 1
    %177 = vsyncpa [#allocation4], 1

</llo_original>
